<compile_context>
chip_gen: v7x
topology: tpu7x:2x2x1
jax: 0.10.0
libtpu: 0.0.40
codegen_flags: <defaults>
</compile_context>

<pallas_src>
import jax
import jax.numpy as jnp
import numpy as np
from jax.experimental import pallas as pl
from jax.experimental.pallas import tpu as pltpu


def mlp_minion_kernel(x_ref,
                      w1_ref, b1_ref, a1_ref,
                      w2_ref, b2_ref, a2_ref,
                      wo_ref, bo_ref,
                      y_ref, h_ref):
    # x block: (C_in, TT) -- channels on sublanes, time on lanes (batch squeezed).
    x = x_ref[...]

    # Block 1: Conv1d(k=1) == channel matmul + bias + PReLU.
    h1 = jnp.dot(w1_ref[...], x, preferred_element_type=jnp.float32) + b1_ref[...]
    h1 = jnp.where(h1 > 0, h1, a1_ref[...] * h1)                     # (H, TT)

    # Block 2.
    h2 = jnp.dot(w2_ref[...], h1, preferred_element_type=jnp.float32) + b2_ref[...]
    h2 = jnp.where(h2 > 0, h2, a2_ref[...] * h2)                     # (H, TT)

    # Output projection (self.W).
    y = jnp.dot(wo_ref[...], h2, preferred_element_type=jnp.float32) + bo_ref[...]

    h_ref[...] = h2.astype(h_ref.dtype)
    y_ref[...] = y.astype(y_ref.dtype)


def _vmem_budget_bytes():
    """Per-generation VMEM budget with headroom for compiler scratch.

    v5e/v6e: 128 MiB physical (scoped default only 16/32 MiB) -> ~100 MiB.
    v7x:      64 MiB physical -> ~51 MiB.  Fallback is the conservative v7x
    number so an unknown / undetectable chip never OOMs.
    """
    phys = 64 << 20
    try:
        phys = int(pltpu.get_tpu_info().vmem_capacity_bytes)
    except Exception:
        pass
    return min(100 << 20, int(phys * 0.8))


def _pick_lane_tile(B, T, C_in, H, O, vmem_budget, param_bytes, lane_tile):
    """Largest lane (time) tile that fits the VMEM budget, multiple of 128."""
    if lane_tile is None:
        # Live per-lane bytes: double-buffered x/y/h blocks + f32 h1/h2 temps.
        per_lane = 4 * (2 * C_in + 2 * O + 2 * H + 2 * H)
        avail = max(1 << 20, vmem_budget - 2 * param_bytes - (4 << 20))
        lane_tile = min(65536, max(128, (avail // per_lane) // 128 * 128))
        # Keep >= 2 grid steps along T when B == 1 so both v7x TCs get work.
        if B == 1 and T > 256:
            lane_tile = min(lane_tile, ((pl.cdiv(T, 2) + 127) // 128) * 128)
    else:
        lane_tile = max(128, (lane_tile // 128) * 128)
    if T <= lane_tile:
        lane_tile = T          # full-extent block: always a legal BlockSpec
    return lane_tile


def mlp_minion_forward(x, params, lane_tile=None):
    """x: (B, C_in, T).  Returns (y, h) like MLPMinion with skip=True."""
    B, C_in, T = x.shape
    w1, b1, a1 = params["w1"], params["b1"], params["a1"]
    w2, b2, a2 = params["w2"], params["b2"], params["a2"]
    wo, bo = params["wo"], params["bo"]
    H = w1.shape[0]
    O = wo.shape[0]

    all_params = (w1, b1, a1, w2, b2, a2, wo, bo)
    param_bytes = sum(int(p.size) * p.dtype.itemsize for p in all_params)

    vmem_budget = _vmem_budget_bytes()
    lane_tile = _pick_lane_tile(B, T, C_in, H, O, vmem_budget, param_bytes,
                                lane_tile)
    grid = (B, pl.cdiv(T, lane_tile))

    # Weights / biases: constant-index full blocks -> resident in VMEM.
    const = lambda arr: pl.BlockSpec(arr.shape, lambda b, i: (0, 0))

    # None == pl.Squeezed(): batch dim is size-1 per step and squeezed away,
    # so the kernel sees 2-D (channels, lanes) refs and outputs land directly
    # in (B, F, T) layout with T on lanes -- no wrapper transposes needed.
    y, h = pl.pallas_call(
        mlp_minion_kernel,
        out_shape=(
            jax.ShapeDtypeStruct((B, O, T), x.dtype),
            jax.ShapeDtypeStruct((B, H, T), x.dtype),
        ),
        grid=grid,
        in_specs=[
            pl.BlockSpec((None, C_in, lane_tile), lambda b, i: (b, 0, i)),
            const(w1), const(b1), const(a1),
            const(w2), const(b2), const(a2),
            const(wo), const(bo),
        ],
        out_specs=(
            pl.BlockSpec((None, O, lane_tile), lambda b, i: (b, 0, i)),
            pl.BlockSpec((None, H, lane_tile), lambda b, i: (b, 0, i)),
        ),
        compiler_params=pltpu.CompilerParams(
            dimension_semantics=("parallel", "parallel"),
            vmem_limit_bytes=int(vmem_budget)),
    )(x, w1, b1, a1, w2, b2, a2, wo, bo)

    return y, h


def init_params(key, num_inputs, hidden_size, num_outputs):
    """Deterministic synthetic parameters (Conv1d k=1 weights squeezed to 2D)."""
    ks = jax.random.split(key, 3)

    def conv1x1(k, fan_out, fan_in):
        # PyTorch-style uniform(-bound, bound), bound = 1/sqrt(fan_in)
        bound = 1.0 / np.sqrt(fan_in)
        kw, kb = jax.random.split(k)
        w = jax.random.uniform(kw, (fan_out, fan_in), jnp.float32, -bound, bound)
        b = jax.random.uniform(kb, (fan_out, 1), jnp.float32, -bound, bound)
        return w, b

    w1, b1 = conv1x1(ks[0], hidden_size, num_inputs)
    w2, b2 = conv1x1(ks[1], hidden_size, hidden_size)
    wo, bo = conv1x1(ks[2], num_outputs, hidden_size)
    # PReLU per-channel weights, PyTorch default init = 0.25
    a1 = jnp.full((hidden_size, 1), 0.25, jnp.float32)
    a2 = jnp.full((hidden_size, 1), 0.25, jnp.float32)
    return dict(w1=w1, b1=b1, a1=a1, w2=w2, b2=b2, a2=a2, wo=wo, bo=bo)


def reference_forward(x, p):
    """Pure-JAX reference of MLPMinion.forward (context=1, eval mode, skip=True)."""
    def prelu(v, a):
        return jnp.where(v > 0, v, a[None] * v)
    h = prelu(jnp.einsum("fc,bct->bft", p["w1"], x) + p["b1"][None], p["a1"])
    h = prelu(jnp.einsum("fc,bct->bft", p["w2"], h) + p["b2"][None], p["a2"])
    y = jnp.einsum("fc,bct->bft", p["wo"], h) + p["bo"][None]
    return y, h


if __name__ == "__main__":
    # Small shapes: batch=2, num_inputs=16, seq len T=16, hidden=32, outputs=8
    B, C_IN, T = 2, 16, 16
    HIDDEN, NUM_OUT = 32, 8

    key = jax.random.PRNGKey(0)
    kx, kp = jax.random.split(key)
    x = jax.random.normal(kx, (B, C_IN, T), dtype=jnp.float32)
    params = init_params(kp, C_IN, HIDDEN, NUM_OUT)

    y, h = mlp_minion_forward(x, params)
    y, h = jax.block_until_ready((y, h))

    y_ref, h_ref = reference_forward(x, params)
    np.testing.assert_allclose(np.asarray(y), np.asarray(y_ref), rtol=1e-5, atol=1e-5)
    np.testing.assert_allclose(np.asarray(h), np.asarray(h_ref), rtol=1e-5, atol=1e-5)

    print("KERNEL_OK")
</pallas_src>

<mosaic_0001>
module attributes {stable_mosaic.version = 11 : i64} {
  func.func @mlp_minion_kernel(%arg0: i32, %arg1: i32, %arg2: memref<1x16x16xf32, #tpu.memory_space<vmem>>, %arg3: memref<32x16xf32, #tpu.memory_space<vmem>>, %arg4: memref<32x1xf32, #tpu.memory_space<vmem>>, %arg5: memref<32x1xf32, #tpu.memory_space<vmem>>, %arg6: memref<32x32xf32, #tpu.memory_space<vmem>>, %arg7: memref<32x1xf32, #tpu.memory_space<vmem>>, %arg8: memref<32x1xf32, #tpu.memory_space<vmem>>, %arg9: memref<8x32xf32, #tpu.memory_space<vmem>>, %arg10: memref<8x1xf32, #tpu.memory_space<vmem>>, %arg11: memref<1x8x16xf32, #tpu.memory_space<vmem>>, %arg12: memref<1x32x16xf32, #tpu.memory_space<vmem>>) attributes {dimension_semantics = [#tpu.dimension_semantics<parallel>, #tpu.dimension_semantics<parallel>], iteration_bounds = array<i64: 2, 1>, scalar_prefetch = 0 : i64, scratch_operands = 0 : i64, tpu.core_type = #tpu.core_type<tc>, window_params = [{transform_indices = @transform_0, window_bounds = array<i64: 1, 16, 16>}, {pipeline_mode = #tpu.pipeline_mode<synchronous>, transform_indices = @transform_1, window_bounds = array<i64: 32, 16>}, {pipeline_mode = #tpu.pipeline_mode<synchronous>, transform_indices = @transform_2, window_bounds = array<i64: 32, 1>}, {pipeline_mode = #tpu.pipeline_mode<synchronous>, transform_indices = @transform_3, window_bounds = array<i64: 32, 1>}, {pipeline_mode = #tpu.pipeline_mode<synchronous>, transform_indices = @transform_4, window_bounds = array<i64: 32, 32>}, {pipeline_mode = #tpu.pipeline_mode<synchronous>, transform_indices = @transform_5, window_bounds = array<i64: 32, 1>}, {pipeline_mode = #tpu.pipeline_mode<synchronous>, transform_indices = @transform_6, window_bounds = array<i64: 32, 1>}, {pipeline_mode = #tpu.pipeline_mode<synchronous>, transform_indices = @transform_7, window_bounds = array<i64: 8, 32>}, {pipeline_mode = #tpu.pipeline_mode<synchronous>, transform_indices = @transform_8, window_bounds = array<i64: 8, 1>}, {transform_indices = @transform_9, window_bounds = array<i64: 1, 8, 16>}, {transform_indices = @transform_10, window_bounds = array<i64: 1, 32, 16>}]} {
    %c0 = arith.constant 0 : index
    %c0_0 = arith.constant 0 : index
    %c0_1 = arith.constant 0 : index
    %0 = vector.load %arg2[%c0, %c0_0, %c0_1] : memref<1x16x16xf32, #tpu.memory_space<vmem>>, vector<1x16x16xf32>
    %1 = vector.shape_cast %0 : vector<1x16x16xf32> to vector<16x16xf32>
    %c0_2 = arith.constant 0 : index
    %c0_3 = arith.constant 0 : index
    %2 = vector.load %arg3[%c0_2, %c0_3] : memref<32x16xf32, #tpu.memory_space<vmem>>, vector<32x16xf32>
    %cst = arith.constant dense<0.000000e+00> : vector<32x16xf32>
    %3 = tpu.matmul %2, %1, %cst {dimension_numbers = #tpu.dot_dimension_numbers<[1], [0], [0], [1], [0, 0, 1, 1], [], []>} : vector<32x16xf32>, vector<16x16xf32>, vector<32x16xf32> -> vector<32x16xf32>
    %c0_4 = arith.constant 0 : index
    %c0_5 = arith.constant 0 : index
    %4 = vector.load %arg4[%c0_4, %c0_5] : memref<32x1xf32, #tpu.memory_space<vmem>>, vector<32x1xf32>
    %5 = vector.broadcast %4 : vector<32x1xf32> to vector<32x16xf32>
    %6 = arith.addf %3, %5 : vector<32x16xf32>
    %cst_6 = arith.constant 0.000000e+00 : f32
    %7 = vector.broadcast %cst_6 : f32 to vector<32x16xf32>
    %8 = arith.cmpf ogt, %6, %7 : vector<32x16xf32>
    %c0_7 = arith.constant 0 : index
    %c0_8 = arith.constant 0 : index
    %9 = vector.load %arg5[%c0_7, %c0_8] : memref<32x1xf32, #tpu.memory_space<vmem>>, vector<32x1xf32>
    %10 = vector.broadcast %9 : vector<32x1xf32> to vector<32x16xf32>
    %11 = arith.mulf %10, %6 : vector<32x16xf32>
    %12 = arith.select %8, %6, %11 : vector<32x16xi1>, vector<32x16xf32>
    %c0_9 = arith.constant 0 : index
    %c0_10 = arith.constant 0 : index
    %13 = vector.load %arg6[%c0_9, %c0_10] : memref<32x32xf32, #tpu.memory_space<vmem>>, vector<32x32xf32>
    %cst_11 = arith.constant dense<0.000000e+00> : vector<32x16xf32>
    %14 = tpu.matmul %13, %12, %cst_11 {dimension_numbers = #tpu.dot_dimension_numbers<[1], [0], [0], [1], [0, 0, 1, 1], [], []>} : vector<32x32xf32>, vector<32x16xf32>, vector<32x16xf32> -> vector<32x16xf32>
    %c0_12 = arith.constant 0 : index
    %c0_13 = arith.constant 0 : index
    %15 = vector.load %arg7[%c0_12, %c0_13] : memref<32x1xf32, #tpu.memory_space<vmem>>, vector<32x1xf32>
    %16 = vector.broadcast %15 : vector<32x1xf32> to vector<32x16xf32>
    %17 = arith.addf %14, %16 : vector<32x16xf32>
    %cst_14 = arith.constant 0.000000e+00 : f32
    %18 = vector.broadcast %cst_14 : f32 to vector<32x16xf32>
    %19 = arith.cmpf ogt, %17, %18 : vector<32x16xf32>
    %c0_15 = arith.constant 0 : index
    %c0_16 = arith.constant 0 : index
    %20 = vector.load %arg8[%c0_15, %c0_16] : memref<32x1xf32, #tpu.memory_space<vmem>>, vector<32x1xf32>
    %21 = vector.broadcast %20 : vector<32x1xf32> to vector<32x16xf32>
    %22 = arith.mulf %21, %17 : vector<32x16xf32>
    %23 = arith.select %19, %17, %22 : vector<32x16xi1>, vector<32x16xf32>
    %c0_17 = arith.constant 0 : index
    %c0_18 = arith.constant 0 : index
    %24 = vector.load %arg9[%c0_17, %c0_18] : memref<8x32xf32, #tpu.memory_space<vmem>>, vector<8x32xf32>
    %cst_19 = arith.constant dense<0.000000e+00> : vector<8x16xf32>
    %25 = tpu.matmul %24, %23, %cst_19 {dimension_numbers = #tpu.dot_dimension_numbers<[1], [0], [0], [1], [0, 0, 1, 1], [], []>} : vector<8x32xf32>, vector<32x16xf32>, vector<8x16xf32> -> vector<8x16xf32>
    %c0_20 = arith.constant 0 : index
    %c0_21 = arith.constant 0 : index
    %26 = vector.load %arg10[%c0_20, %c0_21] : memref<8x1xf32, #tpu.memory_space<vmem>>, vector<8x1xf32>
    %27 = vector.broadcast %26 : vector<8x1xf32> to vector<8x16xf32>
    %28 = arith.addf %25, %27 : vector<8x16xf32>
    %c0_22 = arith.constant 0 : index
    %c0_23 = arith.constant 0 : index
    %c0_24 = arith.constant 0 : index
    %29 = vector.load %arg12[%c0_22, %c0_23, %c0_24] : memref<1x32x16xf32, #tpu.memory_space<vmem>>, vector<1x32x16xf32>
    %30 = vector.shape_cast %29 : vector<1x32x16xf32> to vector<32x16xf32>
    %31 = vector.shape_cast %23 : vector<32x16xf32> to vector<1x32x16xf32>
    tpu.vector_store %arg12[%c0_22, %c0_23, %c0_24], %31 {strides = array<i32>} : memref<1x32x16xf32, #tpu.memory_space<vmem>>, vector<1x32x16xf32>,
    %c0_25 = arith.constant 0 : index
    %c0_26 = arith.constant 0 : index
    %c0_27 = arith.constant 0 : index
    %32 = vector.load %arg11[%c0_25, %c0_26, %c0_27] : memref<1x8x16xf32, #tpu.memory_space<vmem>>, vector<1x8x16xf32>
    %33 = vector.shape_cast %32 : vector<1x8x16xf32> to vector<8x16xf32>
    %34 = vector.shape_cast %28 : vector<8x16xf32> to vector<1x8x16xf32>
    tpu.vector_store %arg11[%c0_25, %c0_26, %c0_27], %34 {strides = array<i32>} : memref<1x8x16xf32, #tpu.memory_space<vmem>>, vector<1x8x16xf32>,
    return
  }
  func.func @transform_0(%arg0: i32, %arg1: i32) -> (i32, i32, i32) {
    %c0_i32 = arith.constant 0 : i32
    %c0_i32_0 = arith.constant 0 : i32
    return %arg0, %c0_i32, %arg1 : i32, i32, i32
  }
  func.func @transform_1(%arg0: i32, %arg1: i32) -> (i32, i32) {
    %c0_i32 = arith.constant 0 : i32
    %c0_i32_0 = arith.constant 0 : i32
    %c0_i32_1 = arith.constant 0 : i32
    return %c0_i32, %c0_i32_0 : i32, i32
  }
  func.func @transform_2(%arg0: i32, %arg1: i32) -> (i32, i32) {
    %c0_i32 = arith.constant 0 : i32
    %c0_i32_0 = arith.constant 0 : i32
    %c0_i32_1 = arith.constant 0 : i32
    return %c0_i32, %c0_i32_0 : i32, i32
  }
  func.func @transform_3(%arg0: i32, %arg1: i32) -> (i32, i32) {
    %c0_i32 = arith.constant 0 : i32
    %c0_i32_0 = arith.constant 0 : i32
    %c0_i32_1 = arith.constant 0 : i32
    return %c0_i32, %c0_i32_0 : i32, i32
  }
  func.func @transform_4(%arg0: i32, %arg1: i32) -> (i32, i32) {
    %c0_i32 = arith.constant 0 : i32
    %c0_i32_0 = arith.constant 0 : i32
    %c0_i32_1 = arith.constant 0 : i32
    return %c0_i32, %c0_i32_0 : i32, i32
  }
  func.func @transform_5(%arg0: i32, %arg1: i32) -> (i32, i32) {
    %c0_i32 = arith.constant 0 : i32
    %c0_i32_0 = arith.constant 0 : i32
    %c0_i32_1 = arith.constant 0 : i32
    return %c0_i32, %c0_i32_0 : i32, i32
  }
  func.func @transform_6(%arg0: i32, %arg1: i32) -> (i32, i32) {
    %c0_i32 = arith.constant 0 : i32
    %c0_i32_0 = arith.constant 0 : i32
    %c0_i32_1 = arith.constant 0 : i32
    return %c0_i32, %c0_i32_0 : i32, i32
  }
  func.func @transform_7(%arg0: i32, %arg1: i32) -> (i32, i32) {
    %c0_i32 = arith.constant 0 : i32
    %c0_i32_0 = arith.constant 0 : i32
    %c0_i32_1 = arith.constant 0 : i32
    return %c0_i32, %c0_i32_0 : i32, i32
  }
  func.func @transform_8(%arg0: i32, %arg1: i32) -> (i32, i32) {
    %c0_i32 = arith.constant 0 : i32
    %c0_i32_0 = arith.constant 0 : i32
    %c0_i32_1 = arith.constant 0 : i32
    return %c0_i32, %c0_i32_0 : i32, i32
  }
  func.func @transform_9(%arg0: i32, %arg1: i32) -> (i32, i32, i32) {
    %c0_i32 = arith.constant 0 : i32
    %c0_i32_0 = arith.constant 0 : i32
    return %arg0, %c0_i32, %arg1 : i32, i32, i32
  }
  func.func @transform_10(%arg0: i32, %arg1: i32) -> (i32, i32, i32) {
    %c0_i32 = arith.constant 0 : i32
    %c0_i32_0 = arith.constant 0 : i32
    return %arg0, %c0_i32, %arg1 : i32, i32, i32
  }
}

</mosaic_0001>

<llo_original>
// kernel: tpu_custom_call.1
$region0: #{tpu_custom_call.1}
  #allocation0 [shape = 'u32[]', space=smem, size = 0x4, offset = 0x4, fixed_abs, tag = 'smem constant byte address 0x4 - core index']
  #allocation1 [shape = 'u32[144,128]{1,0:T(1,128)}', space=vmem, size = 0x12000, scoped, tag = 'internal scratch']
  %s0 = inlined_call_operand.vmem [shape: f32[2,16,16], index: 0, kind: input, shape index: {}]
  %s1 = inlined_call_operand.vmem [shape: f32[32,16], index: 1, kind: input, shape index: {}]
  %s2 = inlined_call_operand.vmem [shape: f32[32,1], index: 2, kind: input, shape index: {}]
  %s3 = inlined_call_operand.vmem [shape: f32[32,1], index: 3, kind: input, shape index: {}]
  %s4 = inlined_call_operand.vmem [shape: f32[32,32], index: 4, kind: input, shape index: {}]
  %s5 = inlined_call_operand.vmem [shape: f32[32,1], index: 5, kind: input, shape index: {}]
  %s6 = inlined_call_operand.vmem [shape: f32[32,1], index: 6, kind: input, shape index: {}]
  %s7 = inlined_call_operand.vmem [shape: f32[8,32], index: 7, kind: input, shape index: {}]
  %s8 = inlined_call_operand.vmem [shape: f32[8,1], index: 8, kind: input, shape index: {}]
  %s9 = inlined_call_operand.hbm [shape: f32[2,8,16], index: 9, kind: output, shape index: {0}]
  %s10 = inlined_call_operand.vmem [shape: f32[2,32,16], index: 10, kind: output, shape index: {1}]
  %11 = xla_tuple %s9, %s10
  %s12 = sld [smem:[#allocation0]]
  $region77: #{tpu_custom_call.1} parent=0
    _
  %s14 = ssub.s32 1, %s12
  %s15 = scalar_select 0, %s14, %s12
  $region1: #{tpu_custom_call.1} parent=0
    #allocation2 [shape = 'u8[8192]{0}', space=vmem, size = 0x2000, scoped, tag = 'output window, operand 0']
    #allocation3 [shape = 's32[2]{0}', space=sflag, size = 0x8, scoped, tag = 'scoped memory for tpu_custom_call.1']
    %16 = vsyncpa [#allocation3], 0
    %s17 = scalar_lea.sflag [#allocation3], 1
    %18 = vsyncpa %s17, 0
    loop: start=0, step=1, limit=4
    $region2: #{tpu_custom_call.1} parent=1 // loop_pre_header
      _
    $region3: #{tpu_custom_call.1} parent=1 // loop_header
      %s20 = sphi 0, %s24
      %p21 = scmp.ge.s32.totalorder %s20, 4
      %s27 = sphi 0, %s39
      %s28 = sphi 0, %s35
      %s29 = sphi 0, %s27
      %s30 = sphi 0, %s28
      %s31 = sphi 0, %s29
      %s32 = sphi 0, %s30
      %s44 = sphi 0, %s46
      %s47 = sphi 0, %s44
      %s48 = sphi 0, %s47
      %s64 = sphi 0, %s48
      %s68 = sphi 0, %s68
      %s70 = sphi 0, %s68
      %s71 = sphi 0, %s70
      %s85 = sphi 0, %s71
      %s89 = sphi 0, %s89
      %s91 = sphi 0, %s89
      %s92 = sphi 0, %s91
      %s106 = sphi 0, %s92
      %s110 = sphi 0, %s110
      %s112 = sphi 0, %s110
      %s113 = sphi 0, %s112
      %s127 = sphi 0, %s113
      %s131 = sphi 0, %s131
      %s133 = sphi 0, %s131
      %s134 = sphi 0, %s133
      %s148 = sphi 0, %s134
      %s152 = sphi 0, %s152
      %s154 = sphi 0, %s152
      %s155 = sphi 0, %s154
      %s169 = sphi 0, %s155
      %s173 = sphi 0, %s173
      %s175 = sphi 0, %s173
      %s176 = sphi 0, %s175
      %s190 = sphi 0, %s176
      %s194 = sphi 0, %s194
      %s196 = sphi 0, %s194
      %s197 = sphi 0, %s196
      %s211 = sphi 0, %s197
      %s215 = sphi 0, %s215
      %s217 = sphi 0, %s215
      %s218 = sphi 0, %s217
      %s232 = sphi 0, %s218
      %s240 = sphi 0, %s242
      %s243 = sphi 0, %s240
      %s244 = sphi 0, %s243
      %s260 = sphi 0, %s244
      %s268 = sphi 0, %s270
      %s271 = sphi 0, %s268
      %s272 = sphi 0, %s271
      %s288 = sphi 0, %s272
    $region4: #{tpu_custom_call.1} parent=1 // loop_header_branch
      %23 = sbr.rel (%p21) target = $region8
    $region5: #{tpu_custom_call.1} parent=1 // loop_body
      %s25 = ssub.s32 %s20, 1
      %s26 = ssub.s32 %s20, 2
      %s33 = sadd.s32 1, %s28
      %p34 = scmp.ge.s32.totalorder %s33, 1
      %s35 = scalar_select %p34, 0, %s33
      %s36 = sadd.s32 1, %s27
      %s37 = scalar_select %p34, %s36, %s27
      %p38 = scmp.ge.s32.totalorder %s37, 2
      %s39 = scalar_select %p38, 0, %s37
      %s40 = ssub.s32 %s27, %s39
      %s41 = ssub.s32 %s28, %s35
      %s42 = sor.u32 %s40, %s41
      %p43 = scmp.eq.s32.totalorder %s42, 0
      %s45 = sadd.s32 %s44, 1
      %s46 = scalar_select %p43, %s44, %s45
      %p49 = pneg %p43
      %p50 = scmp.eq.s32.totalorder %s20, 1
      %p51 = por %p49, %p50
      %p52 = scmp.ne.s32.totalorder %s44, %s47
      %p53 = scmp.eq.s32.totalorder %s20, 0
      %p54 = por %p52, %p53
      %p55 = scmp.ne.s32.totalorder %s44, %s47
      %p56 = scmp.eq.s32.totalorder %s25, 1
      %p57 = por %p55, %p56
      %p58 = scmp.ne.s32.totalorder %s47, %s48
      %p59 = scmp.eq.s32.totalorder %s25, 0
      %p60 = por %p58, %p59
      %p61 = scmp.ne.s32.totalorder %s47, %s48
      %p62 = scmp.eq.s32.totalorder %s26, 1
      %p63 = por %p61, %p62
      %p65 = scmp.ne.s32.totalorder %s48, %s64
      %p66 = scmp.eq.s32.totalorder %s26, 0
      %p67 = por %p65, %p66
      %s69 = sadd.s32 %s68, 1
      %p72 = scmp.eq.s32.totalorder %s20, 1
      %p73 = scmp.ne.s32.totalorder %s68, %s70
      %p74 = scmp.eq.s32.totalorder %s20, 0
      %p75 = por %p73, %p74
      %p76 = scmp.ne.s32.totalorder %s68, %s70
      %p77 = scmp.eq.s32.totalorder %s25, 1
      %p78 = por %p76, %p77
      %p79 = scmp.ne.s32.totalorder %s70, %s71
      %p80 = scmp.eq.s32.totalorder %s25, 0
      %p81 = por %p79, %p80
      %p82 = scmp.ne.s32.totalorder %s70, %s71
      %p83 = scmp.eq.s32.totalorder %s26, 1
      %p84 = por %p82, %p83
      %p86 = scmp.ne.s32.totalorder %s71, %s85
      %p87 = scmp.eq.s32.totalorder %s26, 0
      %p88 = por %p86, %p87
      %s90 = sadd.s32 %s89, 1
      %p93 = scmp.eq.s32.totalorder %s20, 1
      %p94 = scmp.ne.s32.totalorder %s89, %s91
      %p95 = scmp.eq.s32.totalorder %s20, 0
      %p96 = por %p94, %p95
      %p97 = scmp.ne.s32.totalorder %s89, %s91
      %p98 = scmp.eq.s32.totalorder %s25, 1
      %p99 = por %p97, %p98
      %p100 = scmp.ne.s32.totalorder %s91, %s92
      %p101 = scmp.eq.s32.totalorder %s25, 0
      %p102 = por %p100, %p101
      %p103 = scmp.ne.s32.totalorder %s91, %s92
      %p104 = scmp.eq.s32.totalorder %s26, 1
      %p105 = por %p103, %p104
      %p107 = scmp.ne.s32.totalorder %s92, %s106
      %p108 = scmp.eq.s32.totalorder %s26, 0
      %p109 = por %p107, %p108
      %s111 = sadd.s32 %s110, 1
      %p114 = scmp.eq.s32.totalorder %s20, 1
      %p115 = scmp.ne.s32.totalorder %s110, %s112
      %p116 = scmp.eq.s32.totalorder %s20, 0
      %p117 = por %p115, %p116
      %p118 = scmp.ne.s32.totalorder %s110, %s112
      %p119 = scmp.eq.s32.totalorder %s25, 1
      %p120 = por %p118, %p119
      %p121 = scmp.ne.s32.totalorder %s112, %s113
      %p122 = scmp.eq.s32.totalorder %s25, 0
      %p123 = por %p121, %p122
      %p124 = scmp.ne.s32.totalorder %s112, %s113
      %p125 = scmp.eq.s32.totalorder %s26, 1
      %p126 = por %p124, %p125
      %p128 = scmp.ne.s32.totalorder %s113, %s127
      %p129 = scmp.eq.s32.totalorder %s26, 0
      %p130 = por %p128, %p129
      %s132 = sadd.s32 %s131, 1
      %p135 = scmp.eq.s32.totalorder %s20, 1
      %p136 = scmp.ne.s32.totalorder %s131, %s133
      %p137 = scmp.eq.s32.totalorder %s20, 0
      %p138 = por %p136, %p137
      %p139 = scmp.ne.s32.totalorder %s131, %s133
      %p140 = scmp.eq.s32.totalorder %s25, 1
      %p141 = por %p139, %p140
      %p142 = scmp.ne.s32.totalorder %s133, %s134
      %p143 = scmp.eq.s32.totalorder %s25, 0
      %p144 = por %p142, %p143
      %p145 = scmp.ne.s32.totalorder %s133, %s134
      %p146 = scmp.eq.s32.totalorder %s26, 1
      %p147 = por %p145, %p146
      %p149 = scmp.ne.s32.totalorder %s134, %s148
      %p150 = scmp.eq.s32.totalorder %s26, 0
      %p151 = por %p149, %p150
      %s153 = sadd.s32 %s152, 1
      %p156 = scmp.eq.s32.totalorder %s20, 1
      %p157 = scmp.ne.s32.totalorder %s152, %s154
      %p158 = scmp.eq.s32.totalorder %s20, 0
      %p159 = por %p157, %p158
      %p160 = scmp.ne.s32.totalorder %s152, %s154
      %p161 = scmp.eq.s32.totalorder %s25, 1
      %p162 = por %p160, %p161
      %p163 = scmp.ne.s32.totalorder %s154, %s155
      %p164 = scmp.eq.s32.totalorder %s25, 0
      %p165 = por %p163, %p164
      %p166 = scmp.ne.s32.totalorder %s154, %s155
      %p167 = scmp.eq.s32.totalorder %s26, 1
      %p168 = por %p166, %p167
      %p170 = scmp.ne.s32.totalorder %s155, %s169
      %p171 = scmp.eq.s32.totalorder %s26, 0
      %p172 = por %p170, %p171
      %s174 = sadd.s32 %s173, 1
      %p177 = scmp.eq.s32.totalorder %s20, 1
      %p178 = scmp.ne.s32.totalorder %s173, %s175
      %p179 = scmp.eq.s32.totalorder %s20, 0
      %p180 = por %p178, %p179
      %p181 = scmp.ne.s32.totalorder %s173, %s175
      %p182 = scmp.eq.s32.totalorder %s25, 1
      %p183 = por %p181, %p182
      %p184 = scmp.ne.s32.totalorder %s175, %s176
      %p185 = scmp.eq.s32.totalorder %s25, 0
      %p186 = por %p184, %p185
      %p187 = scmp.ne.s32.totalorder %s175, %s176
      %p188 = scmp.eq.s32.totalorder %s26, 1
      %p189 = por %p187, %p188
      %p191 = scmp.ne.s32.totalorder %s176, %s190
      %p192 = scmp.eq.s32.totalorder %s26, 0
      %p193 = por %p191, %p192
      %s195 = sadd.s32 %s194, 1
      %p198 = scmp.eq.s32.totalorder %s20, 1
      %p199 = scmp.ne.s32.totalorder %s194, %s196
      %p200 = scmp.eq.s32.totalorder %s20, 0
      %p201 = por %p199, %p200
      %p202 = scmp.ne.s32.totalorder %s194, %s196
      %p203 = scmp.eq.s32.totalorder %s25, 1
      %p204 = por %p202, %p203
      %p205 = scmp.ne.s32.totalorder %s196, %s197
      %p206 = scmp.eq.s32.totalorder %s25, 0
      %p207 = por %p205, %p206
      %p208 = scmp.ne.s32.totalorder %s196, %s197
      %p209 = scmp.eq.s32.totalorder %s26, 1
      %p210 = por %p208, %p209
      %p212 = scmp.ne.s32.totalorder %s197, %s211
      %p213 = scmp.eq.s32.totalorder %s26, 0
      %p214 = por %p212, %p213
      %s216 = sadd.s32 %s215, 1
      %p219 = scmp.eq.s32.totalorder %s20, 1
      %p220 = scmp.ne.s32.totalorder %s215, %s217
      %p221 = scmp.eq.s32.totalorder %s20, 0
      %p222 = por %p220, %p221
      %p223 = scmp.ne.s32.totalorder %s215, %s217
      %p224 = scmp.eq.s32.totalorder %s25, 1
      %p225 = por %p223, %p224
      %p226 = scmp.ne.s32.totalorder %s217, %s218
      %p227 = scmp.eq.s32.totalorder %s25, 0
      %p228 = por %p226, %p227
      %p229 = scmp.ne.s32.totalorder %s217, %s218
      %p230 = scmp.eq.s32.totalorder %s26, 1
      %p231 = por %p229, %p230
      %p233 = scmp.ne.s32.totalorder %s218, %s232
      %p234 = scmp.eq.s32.totalorder %s26, 0
      %p235 = por %p233, %p234
      %s236 = ssub.s32 %s27, %s39
      %s237 = ssub.s32 %s28, %s35
      %s238 = sor.u32 %s236, %s237
      %p239 = scmp.eq.s32.totalorder %s238, 0
      %s241 = sadd.s32 %s240, 1
      %s242 = scalar_select %p239, %s240, %s241
      %p245 = pneg %p239
      %p246 = scmp.eq.s32.totalorder %s20, 1
      %p247 = por %p245, %p246
      %p248 = scmp.ne.s32.totalorder %s240, %s243
      %p249 = scmp.eq.s32.totalorder %s20, 0
      %p250 = por %p248, %p249
      %p251 = scmp.ne.s32.totalorder %s240, %s243
      %p252 = scmp.eq.s32.totalorder %s25, 1
      %p253 = por %p251, %p252
      %p254 = scmp.ne.s32.totalorder %s243, %s244
      %p255 = scmp.eq.s32.totalorder %s25, 0
      %p256 = por %p254, %p255
      %p257 = scmp.ne.s32.totalorder %s243, %s244
      %p258 = scmp.eq.s32.totalorder %s26, 1
      %p259 = por %p257, %p258
      %p261 = scmp.ne.s32.totalorder %s244, %s260
      %p262 = scmp.eq.s32.totalorder %s26, 0
      %p263 = por %p261, %p262
      %s264 = ssub.s32 %s27, %s39
      %s265 = ssub.s32 %s28, %s35
      %s266 = sor.u32 %s264, %s265
      %p267 = scmp.eq.s32.totalorder %s266, 0
      %s269 = sadd.s32 %s268, 1
      %s270 = scalar_select %p267, %s268, %s269
      %p273 = pneg %p267
      %p274 = scmp.eq.s32.totalorder %s20, 1
      %p275 = por %p273, %p274
      %p276 = scmp.ne.s32.totalorder %s268, %s271
      %p277 = scmp.eq.s32.totalorder %s20, 0
      %p278 = por %p276, %p277
      %p279 = scmp.ne.s32.totalorder %s268, %s271
      %p280 = scmp.eq.s32.totalorder %s25, 1
      %p281 = por %p279, %p280
      %p282 = scmp.ne.s32.totalorder %s271, %s272
      %p283 = scmp.eq.s32.totalorder %s25, 0
      %p284 = por %p282, %p283
      %p285 = scmp.ne.s32.totalorder %s271, %s272
      %p286 = scmp.eq.s32.totalorder %s26, 1
      %p287 = por %p285, %p286
      %p289 = scmp.ne.s32.totalorder %s272, %s288
      %p290 = scmp.eq.s32.totalorder %s26, 0
      %p291 = por %p289, %p290
      %p292 = scmp.le.s32.totalorder 1, %s20
      %p293 = scmp.lt.s32.totalorder %s20, 3
      %p294 = pnand %p292, %p293
      %p295 = pneg %p294
      // Predicated region
      $region9: #{tpu_custom_call.1} parent=5 // pred_check
        _
      $region10: #{tpu_custom_call.1} parent=5 // pred_check_branch
        %297 = sbr.rel (%p294) target = $region12
      $region11: #{tpu_custom_call.1} parent=5 // pred_region
        %s298 = ssub.s32 %s20, 1
        // Predicated region
        $region13: #{tpu_custom_call.1} parent=11 // pred_check
          %p299 = pneg %p81
        $region14: #{tpu_custom_call.1} parent=11 // pred_check_branch
          %301 = sbr.rel (%p299) target = $region16
        $region15: #{tpu_custom_call.1} parent=11 // pred_region
          _
        $region16: #{tpu_custom_call.1} parent=11 // pred_fallthru
          _
        // Predicated region
        $region17: #{tpu_custom_call.1} parent=11 // pred_check
          %p302 = pneg %p102
        $region18: #{tpu_custom_call.1} parent=11 // pred_check_branch
          %304 = sbr.rel (%p302) target = $region20
        $region19: #{tpu_custom_call.1} parent=11 // pred_region
          _
        $region20: #{tpu_custom_call.1} parent=11 // pred_fallthru
          _
        // Predicated region
        $region21: #{tpu_custom_call.1} parent=11 // pred_check
          %p305 = pneg %p123
        $region22: #{tpu_custom_call.1} parent=11 // pred_check_branch
          %307 = sbr.rel (%p305) target = $region24
        $region23: #{tpu_custom_call.1} parent=11 // pred_region
          _
        $region24: #{tpu_custom_call.1} parent=11 // pred_fallthru
          _
        // Predicated region
        $region25: #{tpu_custom_call.1} parent=11 // pred_check
          %p308 = pneg %p144
        $region26: #{tpu_custom_call.1} parent=11 // pred_check_branch
          %310 = sbr.rel (%p308) target = $region28
        $region27: #{tpu_custom_call.1} parent=11 // pred_region
          _
        $region28: #{tpu_custom_call.1} parent=11 // pred_fallthru
          _
        // Predicated region
        $region29: #{tpu_custom_call.1} parent=11 // pred_check
          %p311 = pneg %p165
        $region30: #{tpu_custom_call.1} parent=11 // pred_check_branch
          %313 = sbr.rel (%p311) target = $region32
        $region31: #{tpu_custom_call.1} parent=11 // pred_region
          _
        $region32: #{tpu_custom_call.1} parent=11 // pred_fallthru
          _
        // Predicated region
        $region33: #{tpu_custom_call.1} parent=11 // pred_check
          %p314 = pneg %p186
        $region34: #{tpu_custom_call.1} parent=11 // pred_check_branch
          %316 = sbr.rel (%p314) target = $region36
        $region35: #{tpu_custom_call.1} parent=11 // pred_region
          _
        $region36: #{tpu_custom_call.1} parent=11 // pred_fallthru
          _
        // Predicated region
        $region37: #{tpu_custom_call.1} parent=11 // pred_check
          %p317 = pneg %p207
        $region38: #{tpu_custom_call.1} parent=11 // pred_check_branch
          %319 = sbr.rel (%p317) target = $region40
        $region39: #{tpu_custom_call.1} parent=11 // pred_region
          _
        $region40: #{tpu_custom_call.1} parent=11 // pred_fallthru
          _
        // Predicated region
        $region41: #{tpu_custom_call.1} parent=11 // pred_check
          %p320 = pneg %p228
        $region42: #{tpu_custom_call.1} parent=11 // pred_check_branch
          %322 = sbr.rel (%p320) target = $region44
        $region43: #{tpu_custom_call.1} parent=11 // pred_region
          _
        $region44: #{tpu_custom_call.1} parent=11 // pred_fallthru
          _
      $region12: #{tpu_custom_call.1} parent=5 // pred_fallthru
        _
      %p323 = scmp.lt.s32.totalorder %s20, 2
      // Predicated region
      $region45: #{tpu_custom_call.1} parent=5 // pred_check
        %p324 = pneg %p323
      $region46: #{tpu_custom_call.1} parent=5 // pred_check_branch
        %326 = sbr.rel (%p324) target = $region48
      $region47: #{tpu_custom_call.1} parent=5 // pred_region
        // Predicated region
        $region49: #{tpu_custom_call.1} parent=47 // pred_check
          %p327 = pneg %p54
        $region50: #{tpu_custom_call.1} parent=47 // pred_check_branch
          %329 = sbr.rel (%p327) target = $region52
        $region51: #{tpu_custom_call.1} parent=47 // pred_region
          %p330 = scmp.lt.s32.totalorder %s27, 1
          %s331 = scalar_select %p330, %s27, 1
          %p332 = scmp.lt.s32.totalorder %s28, 0
          %s333 = scalar_select %p332, %s28, 0
          %s334 = smul.addr %s331, 2
          %s335 = sadd.s32 %s333, %s334
          %s336 = smul.addr %s335, 8
          %s337 = scalar_lea.vmem %s0, %s336
        $region52: #{tpu_custom_call.1} parent=47 // pred_fallthru
          _
      $region48: #{tpu_custom_call.1} parent=5 // pred_fallthru
        _
      %p338 = scmp.le.s32.totalorder 1, %s20
      %p339 = scmp.lt.s32.totalorder %s20, 3
      %p340 = pnand %p338, %p339
      %p341 = pneg %p340
      // Predicated region
      $region53: #{tpu_custom_call.1} parent=5 // pred_check
        _
      $region54: #{tpu_custom_call.1} parent=5 // pred_check_branch
        %343 = sbr.rel (%p340) target = $region56
      $region55: #{tpu_custom_call.1} parent=5 // pred_region
        %s344 = ssub.s32 %s20, 1
        %p345 = scmp.lt.s32.totalorder %s29, 1
        %s346 = scalar_select %p345, %s29, 1
        %p347 = scmp.lt.s32.totalorder %s30, 0
        %s348 = scalar_select %p347, %s30, 0
        %s349 = smul.addr %s346, 2
        %s350 = sadd.s32 %s348, %s349
        %s351 = smul.addr %s350, 8
        %s352 = scalar_lea.vmem %s0, %s351
        %p353 = pneg %p60
        %p354 = pneg %p57
        %p355 = pneg %p81
        %p356 = pneg %p78
        %p357 = pneg %p102
        %p358 = pneg %p99
        %p359 = pneg %p123
        %p360 = pneg %p120
        %p361 = pneg %p144
        %p362 = pneg %p141
        %p363 = pneg %p165
        %p364 = pneg %p162
        %p365 = pneg %p186
        %p366 = pneg %p183
        %p367 = pneg %p207
        %p368 = pneg %p204
        %p369 = pneg %p228
        %p370 = pneg %p225
        %p371 = pneg %p256
        %p372 = pneg %p253
        %s373 = sand.u32 %s243, 1
        %s374 = scalar_lea.sflag [#allocation3], %s373
        %s375 = sand.u32 %s243, 1
        %s376 = smul.addr %s375, 8
        %s377 = scalar_lea.vmem [#allocation2], %s376
        %p378 = pneg %p284
        %p379 = pneg %p281
        %p380 = scmp.lt.s32.totalorder %s29, 1
        %s381 = scalar_select %p380, %s29, 1
        %p382 = scmp.lt.s32.totalorder %s30, 0
        %s383 = scalar_select %p382, %s30, 0
        %s384 = smul.addr %s381, 4
        %s385 = sadd.s32 %s383, %s384
        %s386 = smul.addr %s385, 8
        %s387 = scalar_lea.vmem %s10, %s386
        %p388 = scmp.lt.s32.totalorder %s29, 1
        %s389 = scalar_select %p388, %s29, 1
        %p390 = scmp.lt.s32.totalorder %s30, 0
        %s391 = scalar_select %p390, %s30, 0
        %s392 = smul.addr %s389, 2
        %s393 = sadd.s32 %s391, %s392
        %s394 = smul.addr %s393, 8
        %s395 = scalar_lea.vmem %s0, %s394
        %p396 = scmp.lt.s32.totalorder %s29, 1
        %s397 = scalar_select %p396, %s29, 1
        %p398 = scmp.lt.s32.totalorder %s30, 0
        %s399 = scalar_select %p398, %s30, 0
        %s400 = smul.addr %s397, 4
        %s401 = sadd.s32 %s399, %s400
        %s402 = smul.addr %s401, 8
        %s403 = scalar_lea.vmem %s10, %s402
        %v404 = vld [vmem:[%s395] sm:$0xff]
        %v405 = vld [vmem:[%s395 + $0x8] sm:$0xff]
        %v406 = vld [vmem:[%s1] sm:$0xff]
        %v407 = vld [vmem:[%s1 + $0x8] sm:$0xff]
        %v408 = vld [vmem:[%s1 + $0x10] sm:$0xff]
        %v409 = vld [vmem:[%s1 + $0x18] sm:$0xff]
        %v410 = vld [vmem:[%s2] sm:$0xff]
        %v411 = vld [vmem:[%s2 + $0x8] sm:$0xff]
        %v412 = vld [vmem:[%s2 + $0x10] sm:$0xff]
        %v413 = vld [vmem:[%s2 + $0x18] sm:$0xff]
        %415 = vset.pattern.permute.xlu0 0
        %416 = vperm.xlu0 %415, %v410
        %v417 = vpop.permute.xlu0 %416
        %420 = vset.pattern.permute.xlu0 0
        %421 = vperm.xlu0 %420, %v411
        %v422 = vpop.permute.xlu0 %421
        %425 = vset.pattern.permute.xlu0 0
        %426 = vperm.xlu0 %425, %v412
        %v427 = vpop.permute.xlu0 %426
        %430 = vset.pattern.permute.xlu0 0
        %431 = vperm.xlu0 %430, %v413
        %v432 = vpop.permute.xlu0 %431
        %vm434 = vcmask 130048
        %v436 = vsel %vm434, %v406, 0
        %v439 = vsel %vm434, %v407, 0
        %v442 = vsel %vm434, %v408, 0
        %v445 = vsel %vm434, %v409, 0
        %447 = vmatprep.subr.mxu0 0.0
        %448 = vmatpush1.msra.mxu0 %v404
        %449 = vmatprep.subr.mxu0 0.0
        %450 = vmatpush1.msra.mxu0 %v405
        %451 = vmatprep.subr.mxu0 0.0
        %452 = vmatpush1.msra.mxu0 0.0
        %453 = vmatprep.subr.mxu0 0.0
        %454 = vmatpush1.msra.mxu0 0.0
        %455 = vmatprep.subr.mxu0 0.0
        %456 = vmatpush1.msra.mxu0 0.0
        %457 = vmatprep.subr.mxu0 0.0
        %458 = vmatpush1.msra.mxu0 0.0
        %459 = vmatprep.subr.mxu0 0.0
        %460 = vmatpush1.msra.mxu0 0.0
        %461 = vmatprep.subr.mxu0 0.0
        %462 = vmatpush1.msra.mxu0 0.0
        %463 = vmatprep.subr.mxu0 0.0
        %464 = vmatpush1.msra.mxu0 0.0
        %465 = vmatprep.subr.mxu0 0.0
        %466 = vmatpush1.msra.mxu0 0.0
        %467 = vmatprep.subr.mxu0 0.0
        %468 = vmatpush1.msra.mxu0 0.0
        %469 = vmatprep.subr.mxu0 0.0
        %470 = vmatpush1.msra.mxu0 0.0
        %471 = vmatprep.subr.mxu0 0.0
        %472 = vmatpush1.msra.mxu0 0.0
        %473 = vmatprep.subr.mxu0 0.0
        %474 = vmatpush1.msra.mxu0 0.0
        %475 = vmatprep.subr.mxu0 0.0
        %476 = vmatpush1.msra.mxu0 0.0
        %477 = vmatprep.subr.mxu0 0.0
        %478 = vmatpush1.msra.mxu0 0.0
        %479 = vmatprep.subr.mxu0 0.0
        %480 = vmatpush1.msra.mxu0 0.0
        %481 = vmatprep.subr.mxu0 0.0
        %482 = vmatpush1.msra.mxu0 0.0
        %483 = vmatprep.subr.mxu0 0.0
        %484 = vmatpush1.msra.mxu0 0.0
        %485 = vmatprep.subr.mxu0 0.0
        %486 = vmatpush1.msra.mxu0 0.0
        %487 = vmatprep.subr.mxu0 0.0
        %488 = vmatpush1.msra.mxu0 0.0
        %489 = vmatprep.subr.mxu0 0.0
        %490 = vmatpush1.msra.mxu0 0.0
        %491 = vmatprep.subr.mxu0 0.0
        %492 = vmatpush1.msra.mxu0 0.0
        %493 = vmatprep.subr.mxu0 0.0
        %494 = vmatpush1.msra.mxu0 0.0
        %495 = vmatprep.subr.mxu0 0.0
        %496 = vmatpush1.msra.mxu0 0.0
        %497 = vmatprep.subr.mxu0 0.0
        %498 = vmatpush1.msra.mxu0 0.0
        %499 = vmatprep.subr.mxu0 0.0
        %500 = vmatpush1.msra.mxu0 0.0
        %501 = vmatprep.subr.mxu0 0.0
        %502 = vmatpush1.msra.mxu0 0.0
        %503 = vmatprep.subr.mxu0 0.0
        %504 = vmatpush1.msra.mxu0 0.0
        %505 = vmatprep.subr.mxu0 0.0
        %506 = vmatpush1.msra.mxu0 0.0
        %507 = vmatprep.subr.mxu0 0.0
        %508 = vmatpush1.msra.mxu0 0.0
        %509 = vmatprep.subr.mxu0 0.0
        %510 = vmatpush1.msra.mxu0 0.0
        %511 = vmatprep.mubr.f32.mxu0 0.0
        %512 = vmatmul.mubr.f32.gmra.mrb[0].mxu0 %v436
        %v513 = vpop.f32.mrb[0].mxu0
        %v514 = vadd.f32 %v417, %v513
        %v515 = vpop.f32.mrb[0].mxu0
        %516 = vmatprep.mubr.f32.mxu0 0.0
        %517 = vmatmul.mubr.f32.gmra.mrb[0].mxu0 %v439
        %v518 = vpop.f32.mrb[0].mxu0
        %v519 = vadd.f32 %v422, %v518
        %v520 = vpop.f32.mrb[0].mxu0
        %521 = vmatprep.mubr.f32.mxu0 0.0
        %522 = vmatmul.mubr.f32.gmra.mrb[0].mxu0 %v442
        %v523 = vpop.f32.mrb[0].mxu0
        %v524 = vadd.f32 %v427, %v523
        %v525 = vpop.f32.mrb[0].mxu0
        %526 = vmatprep.mubr.f32.mxu0 0.0
        %527 = vmatmul.mubr.f32.gmra.mrb[0].mxu0 %v445
        %v528 = vpop.f32.mrb[0].mxu0
        %v529 = vadd.f32 %v432, %v528
        %v530 = vpop.f32.mrb[0].mxu0
        %531 = vdwg.mxu0
        %vm532 = vcmp.gt.f32.partialorder %v514, 0.0
        %vm533 = vcmp.gt.f32.partialorder %v519, 0.0
        %vm534 = vcmp.gt.f32.partialorder %v524, 0.0
        %vm535 = vcmp.gt.f32.partialorder %v529, 0.0
        %v536 = vld [vmem:[%s3] sm:$0xff]
        %v537 = vld [vmem:[%s3 + $0x8] sm:$0xff]
        %v538 = vld [vmem:[%s3 + $0x10] sm:$0xff]
        %v539 = vld [vmem:[%s3 + $0x18] sm:$0xff]
        %541 = vset.pattern.permute.xlu0 0
        %542 = vperm.xlu0 %541, %v536
        %v543 = vpop.permute.xlu0 %542
        %546 = vset.pattern.permute.xlu0 0
        %547 = vperm.xlu0 %546, %v537
        %v548 = vpop.permute.xlu0 %547
        %551 = vset.pattern.permute.xlu0 0
        %552 = vperm.xlu0 %551, %v538
        %v553 = vpop.permute.xlu0 %552
        %556 = vset.pattern.permute.xlu0 0
        %557 = vperm.xlu0 %556, %v539
        %v558 = vpop.permute.xlu0 %557
        %v560 = vmul.f32 %v543, %v514
        %v561 = vmul.f32 %v548, %v519
        %v562 = vmul.f32 %v553, %v524
        %v563 = vmul.f32 %v558, %v529
        %v564 = vsel %vm532, %v514, %v560
        %v565 = vsel %vm533, %v519, %v561
        %v566 = vsel %vm534, %v524, %v562
        %v567 = vsel %vm535, %v529, %v563
        %v568 = vld [vmem:[%s4] sm:$0xff]
        %v569 = vld [vmem:[%s4 + $0x8] sm:$0xff]
        %v570 = vld [vmem:[%s4 + $0x10] sm:$0xff]
        %v571 = vld [vmem:[%s4 + $0x18] sm:$0xff]
        %v572 = vld [vmem:[%s5] sm:$0xff]
        %v573 = vld [vmem:[%s5 + $0x8] sm:$0xff]
        %v574 = vld [vmem:[%s5 + $0x10] sm:$0xff]
        %v575 = vld [vmem:[%s5 + $0x18] sm:$0xff]
        %577 = vset.pattern.permute.xlu0 0
        %578 = vperm.xlu0 %577, %v572
        %v579 = vpop.permute.xlu0 %578
        %582 = vset.pattern.permute.xlu0 0
        %583 = vperm.xlu0 %582, %v573
        %v584 = vpop.permute.xlu0 %583
        %587 = vset.pattern.permute.xlu0 0
        %588 = vperm.xlu0 %587, %v574
        %v589 = vpop.permute.xlu0 %588
        %592 = vset.pattern.permute.xlu0 0
        %593 = vperm.xlu0 %592, %v575
        %v594 = vpop.permute.xlu0 %593
        %vm596 = vcmask 261120
        %v598 = vsel %vm596, %v568, 0
        %v601 = vsel %vm596, %v569, 0
        %v604 = vsel %vm596, %v570, 0
        %v607 = vsel %vm596, %v571, 0
        %609 = vmatprep.subr.mxu0 0.0
        %610 = vmatpush1.msra.mxu0 %v564
        %611 = vmatprep.subr.mxu0 0.0
        %612 = vmatpush1.msra.mxu0 %v565
        %613 = vmatprep.subr.mxu0 0.0
        %614 = vmatpush1.msra.mxu0 %v566
        %615 = vmatprep.subr.mxu0 0.0
        %616 = vmatpush1.msra.mxu0 %v567
        %617 = vmatprep.subr.mxu0 0.0
        %618 = vmatpush1.msra.mxu0 0.0
        %619 = vmatprep.subr.mxu0 0.0
        %620 = vmatpush1.msra.mxu0 0.0
        %621 = vmatprep.subr.mxu0 0.0
        %622 = vmatpush1.msra.mxu0 0.0
        %623 = vmatprep.subr.mxu0 0.0
        %624 = vmatpush1.msra.mxu0 0.0
        %625 = vmatprep.subr.mxu0 0.0
        %626 = vmatpush1.msra.mxu0 0.0
        %627 = vmatprep.subr.mxu0 0.0
        %628 = vmatpush1.msra.mxu0 0.0
        %629 = vmatprep.subr.mxu0 0.0
        %630 = vmatpush1.msra.mxu0 0.0
        %631 = vmatprep.subr.mxu0 0.0
        %632 = vmatpush1.msra.mxu0 0.0
        %633 = vmatprep.subr.mxu0 0.0
        %634 = vmatpush1.msra.mxu0 0.0
        %635 = vmatprep.subr.mxu0 0.0
        %636 = vmatpush1.msra.mxu0 0.0
        %637 = vmatprep.subr.mxu0 0.0
        %638 = vmatpush1.msra.mxu0 0.0
        %639 = vmatprep.subr.mxu0 0.0
        %640 = vmatpush1.msra.mxu0 0.0
        %641 = vmatprep.subr.mxu0 0.0
        %642 = vmatpush1.msra.mxu0 0.0
        %643 = vmatprep.subr.mxu0 0.0
        %644 = vmatpush1.msra.mxu0 0.0
        %645 = vmatprep.subr.mxu0 0.0
        %646 = vmatpush1.msra.mxu0 0.0
        %647 = vmatprep.subr.mxu0 0.0
        %648 = vmatpush1.msra.mxu0 0.0
        %649 = vmatprep.subr.mxu0 0.0
        %650 = vmatpush1.msra.mxu0 0.0
        %651 = vmatprep.subr.mxu0 0.0
        %652 = vmatpush1.msra.mxu0 0.0
        %653 = vmatprep.subr.mxu0 0.0
        %654 = vmatpush1.msra.mxu0 0.0
        %655 = vmatprep.subr.mxu0 0.0
        %656 = vmatpush1.msra.mxu0 0.0
        %657 = vmatprep.subr.mxu0 0.0
        %658 = vmatpush1.msra.mxu0 0.0
        %659 = vmatprep.subr.mxu0 0.0
        %660 = vmatpush1.msra.mxu0 0.0
        %661 = vmatprep.subr.mxu0 0.0
        %662 = vmatpush1.msra.mxu0 0.0
        %663 = vmatprep.subr.mxu0 0.0
        %664 = vmatpush1.msra.mxu0 0.0
        %665 = vmatprep.subr.mxu0 0.0
        %666 = vmatpush1.msra.mxu0 0.0
        %667 = vmatprep.subr.mxu0 0.0
        %668 = vmatpush1.msra.mxu0 0.0
        %669 = vmatprep.subr.mxu0 0.0
        %670 = vmatpush1.msra.mxu0 0.0
        %671 = vmatprep.subr.mxu0 0.0
        %672 = vmatpush1.msra.mxu0 0.0
        %673 = vmatprep.mubr.f32.mxu0 0.0
        %674 = vmatmul.mubr.f32.gmra.mrb[0].mxu0 %v598
        %v675 = vpop.f32.mrb[0].mxu0
        %v676 = vadd.f32 %v579, %v675
        %v677 = vpop.f32.mrb[0].mxu0
        %678 = vmatprep.mubr.f32.mxu0 0.0
        %679 = vmatmul.mubr.f32.gmra.mrb[0].mxu0 %v601
        %v680 = vpop.f32.mrb[0].mxu0
        %v681 = vadd.f32 %v584, %v680
        %v682 = vpop.f32.mrb[0].mxu0
        %683 = vmatprep.mubr.f32.mxu0 0.0
        %684 = vmatmul.mubr.f32.gmra.mrb[0].mxu0 %v604
        %v685 = vpop.f32.mrb[0].mxu0
        %v686 = vadd.f32 %v589, %v685
        %v687 = vpop.f32.mrb[0].mxu0
        %688 = vmatprep.mubr.f32.mxu0 0.0
        %689 = vmatmul.mubr.f32.gmra.mrb[0].mxu0 %v607
        %v690 = vpop.f32.mrb[0].mxu0
        %v691 = vadd.f32 %v594, %v690
        %v692 = vpop.f32.mrb[0].mxu0
        %693 = vdwg.mxu0
        %vm694 = vcmp.gt.f32.partialorder %v676, 0.0
        %vm695 = vcmp.gt.f32.partialorder %v681, 0.0
        %vm696 = vcmp.gt.f32.partialorder %v686, 0.0
        %vm697 = vcmp.gt.f32.partialorder %v691, 0.0
        %v698 = vld [vmem:[%s6] sm:$0xff]
        %v699 = vld [vmem:[%s6 + $0x8] sm:$0xff]
        %v700 = vld [vmem:[%s6 + $0x10] sm:$0xff]
        %v701 = vld [vmem:[%s6 + $0x18] sm:$0xff]
        %703 = vset.pattern.permute.xlu0 0
        %704 = vperm.xlu0 %703, %v698
        %v705 = vpop.permute.xlu0 %704
        %708 = vset.pattern.permute.xlu0 0
        %709 = vperm.xlu0 %708, %v699
        %v710 = vpop.permute.xlu0 %709
        %713 = vset.pattern.permute.xlu0 0
        %714 = vperm.xlu0 %713, %v700
        %v715 = vpop.permute.xlu0 %714
        %718 = vset.pattern.permute.xlu0 0
        %719 = vperm.xlu0 %718, %v701
        %v720 = vpop.permute.xlu0 %719
        %v722 = vmul.f32 %v705, %v676
        %v723 = vmul.f32 %v710, %v681
        %v724 = vmul.f32 %v715, %v686
        %v725 = vmul.f32 %v720, %v691
        %v726 = vsel %vm694, %v676, %v722
        %v727 = vsel %vm695, %v681, %v723
        %v728 = vsel %vm696, %v686, %v724
        %v729 = vsel %vm697, %v691, %v725
        %v730 = vld [vmem:[%s7] sm:$0xff]
        %v731 = vld [vmem:[%s8] sm:$0xff]
        %733 = vset.pattern.permute.xlu0 0
        %734 = vperm.xlu0 %733, %v731
        %v735 = vpop.permute.xlu0 %734
        %v738 = vsel %vm596, %v730, 0
        %740 = vmatprep.subr.mxu0 0.0
        %741 = vmatpush1.msra.mxu0 %v726
        %742 = vmatprep.subr.mxu0 0.0
        %743 = vmatpush1.msra.mxu0 %v727
        %744 = vmatprep.subr.mxu0 0.0
        %745 = vmatpush1.msra.mxu0 %v728
        %746 = vmatprep.subr.mxu0 0.0
        %747 = vmatpush1.msra.mxu0 %v729
        %748 = vmatprep.subr.mxu0 0.0
        %749 = vmatpush1.msra.mxu0 0.0
        %750 = vmatprep.subr.mxu0 0.0
        %751 = vmatpush1.msra.mxu0 0.0
        %752 = vmatprep.subr.mxu0 0.0
        %753 = vmatpush1.msra.mxu0 0.0
        %754 = vmatprep.subr.mxu0 0.0
        %755 = vmatpush1.msra.mxu0 0.0
        %756 = vmatprep.subr.mxu0 0.0
        %757 = vmatpush1.msra.mxu0 0.0
        %758 = vmatprep.subr.mxu0 0.0
        %759 = vmatpush1.msra.mxu0 0.0
        %760 = vmatprep.subr.mxu0 0.0
        %761 = vmatpush1.msra.mxu0 0.0
        %762 = vmatprep.subr.mxu0 0.0
        %763 = vmatpush1.msra.mxu0 0.0
        %764 = vmatprep.subr.mxu0 0.0
        %765 = vmatpush1.msra.mxu0 0.0
        %766 = vmatprep.subr.mxu0 0.0
        %767 = vmatpush1.msra.mxu0 0.0
        %768 = vmatprep.subr.mxu0 0.0
        %769 = vmatpush1.msra.mxu0 0.0
        %770 = vmatprep.subr.mxu0 0.0
        %771 = vmatpush1.msra.mxu0 0.0
        %772 = vmatprep.subr.mxu0 0.0
        %773 = vmatpush1.msra.mxu0 0.0
        %774 = vmatprep.subr.mxu0 0.0
        %775 = vmatpush1.msra.mxu0 0.0
        %776 = vmatprep.subr.mxu0 0.0
        %777 = vmatpush1.msra.mxu0 0.0
        %778 = vmatprep.subr.mxu0 0.0
        %779 = vmatpush1.msra.mxu0 0.0
        %780 = vmatprep.subr.mxu0 0.0
        %781 = vmatpush1.msra.mxu0 0.0
        %782 = vmatprep.subr.mxu0 0.0
        %783 = vmatpush1.msra.mxu0 0.0
        %784 = vmatprep.subr.mxu0 0.0
        %785 = vmatpush1.msra.mxu0 0.0
        %786 = vmatprep.subr.mxu0 0.0
        %787 = vmatpush1.msra.mxu0 0.0
        %788 = vmatprep.subr.mxu0 0.0
        %789 = vmatpush1.msra.mxu0 0.0
        %790 = vmatprep.subr.mxu0 0.0
        %791 = vmatpush1.msra.mxu0 0.0
        %792 = vmatprep.subr.mxu0 0.0
        %793 = vmatpush1.msra.mxu0 0.0
        %794 = vmatprep.subr.mxu0 0.0
        %795 = vmatpush1.msra.mxu0 0.0
        %796 = vmatprep.subr.mxu0 0.0
        %797 = vmatpush1.msra.mxu0 0.0
        %798 = vmatprep.subr.mxu0 0.0
        %799 = vmatpush1.msra.mxu0 0.0
        %800 = vmatprep.subr.mxu0 0.0
        %801 = vmatpush1.msra.mxu0 0.0
        %802 = vmatprep.subr.mxu0 0.0
        %803 = vmatpush1.msra.mxu0 0.0
        %804 = vmatprep.mubr.f32.mxu0 0.0
        %805 = vmatmul.mubr.f32.gmra.mrb[0].mxu0 %v738
        %v806 = vpop.f32.mrb[0].mxu0
        %v807 = vadd.f32 %v735, %v806
        %v808 = vpop.f32.mrb[0].mxu0
        %809 = vdwg.mxu0
        %810 = vst.msk [vmem:[%s403] sm:$0xff] %vm434, %v726
        %811 = vst.msk [vmem:[%s403 + $0x8] sm:$0xff] %vm434, %v727
        %812 = vst.msk [vmem:[%s403 + $0x10] sm:$0xff] %vm434, %v728
        %813 = vst.msk [vmem:[%s403 + $0x18] sm:$0xff] %vm434, %v729
        %814 = vst.msk [vmem:[%s377] sm:$0xff] %vm434, %v807
        %s815 = sand.u32 %s243, 1
        %s816 = scalar_lea.sflag [#allocation3], %s815
        %s817 = sand.u32 %s243, 1
        %s818 = smul.addr %s817, 8
        %s819 = scalar_lea.vmem [#allocation2], %s818
        %p820 = scmp.lt.s32.totalorder %s29, 1
        %s821 = scalar_select %p820, %s29, 1
        %p822 = scmp.lt.s32.totalorder %s30, 0
        %s823 = scalar_select %p822, %s30, 0
        %s824 = smul.addr %s821, 4
        %s825 = sadd.s32 %s823, %s824
        %s826 = smul.addr %s825, 8
        %s827 = scalar_lea.vmem %s10, %s826
        // Predicated region
        $region57: #{tpu_custom_call.1} parent=55 // pred_check
          %p828 = pneg %p253
        $region58: #{tpu_custom_call.1} parent=55 // pred_check_branch
          %830 = sbr.rel (%p828) target = $region60
        $region59: #{tpu_custom_call.1} parent=55 // pred_region
          %s832 = ssub.s32 128, 128
          %833 = vsyncadd %s816, %s832
          %s834 = sadd.s32 %s30, %s29
          %s835 = smul.addr %s834, 128
          %s836 = scalar_lea.hbm %s9, %s835
          %s838 = sshll.u32 %s819, 4
          %s839 = int_to_ptr.vmem [resolvable:$true] %s838
          %841 = dma.vmem_to_hbm [thread:$0]  %s839, 128, %s836, %s816
        $region60: #{tpu_custom_call.1} parent=55 // pred_fallthru
          _
        // Predicated region
        $region61: #{tpu_custom_call.1} parent=55 // pred_check
          %p842 = pneg %p281
        $region62: #{tpu_custom_call.1} parent=55 // pred_check_branch
          %844 = sbr.rel (%p842) target = $region64
        $region63: #{tpu_custom_call.1} parent=55 // pred_region
          _
        $region64: #{tpu_custom_call.1} parent=55 // pred_fallthru
          _
      $region56: #{tpu_custom_call.1} parent=5 // pred_fallthru
        _
      %p845 = scmp.le.s32.totalorder 2, %s20
      // Predicated region
      $region65: #{tpu_custom_call.1} parent=5 // pred_check
        %p846 = pneg %p845
      $region66: #{tpu_custom_call.1} parent=5 // pred_check_branch
        %848 = sbr.rel (%p846) target = $region68
      $region67: #{tpu_custom_call.1} parent=5 // pred_region
        %s849 = ssub.s32 %s20, 2
        // Predicated region
        $region69: #{tpu_custom_call.1} parent=67 // pred_check
          %p850 = pneg %p259
        $region70: #{tpu_custom_call.1} parent=67 // pred_check_branch
          %852 = sbr.rel (%p850) target = $region72
        $region71: #{tpu_custom_call.1} parent=67 // pred_region
          %s853 = sand.u32 %s244, 1
          %s854 = scalar_lea.sflag [#allocation3], %s853
          %s855 = sand.u32 %s244, 1
          %s856 = smul.addr %s855, 8
          %s857 = scalar_lea.vmem [#allocation2], %s856
          %858 = dma.done %s854, 128
        $region72: #{tpu_custom_call.1} parent=67 // pred_fallthru
          _
        // Predicated region
        $region73: #{tpu_custom_call.1} parent=67 // pred_check
          %p859 = pneg %p287
        $region74: #{tpu_custom_call.1} parent=67 // pred_check_branch
          %861 = sbr.rel (%p859) target = $region76
        $region75: #{tpu_custom_call.1} parent=67 // pred_region
          %p862 = scmp.lt.s32.totalorder %s31, 1
          %s863 = scalar_select %p862, %s31, 1
          %p864 = scmp.lt.s32.totalorder %s32, 0
          %s865 = scalar_select %p864, %s32, 0
          %s866 = smul.addr %s863, 4
          %s867 = sadd.s32 %s865, %s866
          %s868 = smul.addr %s867, 8
          %s869 = scalar_lea.vmem %s10, %s868
        $region76: #{tpu_custom_call.1} parent=67 // pred_fallthru
          _
      $region68: #{tpu_custom_call.1} parent=5 // pred_fallthru
        _
    $region6: #{tpu_custom_call.1} parent=1 // loop_footer
      %s24 = sadd.s32 1, %s20
    $region7: #{tpu_custom_call.1} parent=1 // loop_footer_branch
      %19 = sbr.rel target = $region3
    $region8: #{tpu_custom_call.1} parent=1 // loop_exit
      _
    %870 = vsyncpa [#allocation3], 1
    %s871 = scalar_lea.sflag [#allocation3], 1
    %872 = vsyncpa %s871, 1

</llo_original>
